<compile_context>
chip_gen: v5e
topology: v5e:2x2
jax: 0.10.0
libtpu: 0.0.40
codegen_flags: <defaults>
</compile_context>

<pallas_src>
import functools

import jax
import jax.numpy as jnp
from jax.experimental import pallas as pl
from jax.experimental.pallas import tpu as pltpu

_EPS = 1e-6


# --------------------------- VMEM / tiling helpers ----------------------------
def _vmem_limit_bytes():
    """Generation-aware scoped-VMEM limit (v7x: 64 MiB physical, v5e/v6e: 128)."""
    try:
        cap = int(pltpu.get_tpu_info().vmem_capacity_bytes)
    except Exception:  # interpret mode / older jax: assume the smallest (v7x)
        cap = 64 * 1024 * 1024
    return max(16 * 1024 * 1024, min((cap * 3) // 4, 96 * 1024 * 1024))


def _pick_col_tile(n, l, itemsize, vmem_limit):
    """Largest multiple-of-128 divisor of L whose per-step working set fits."""

    def step_bytes(tw):
        # in-block + out-block, each double-buffered, plus ~3 block-sized f32
        # temporaries for the variance math.
        return 4 * n * tw * itemsize + 3 * n * tw * 4

    budget = min(vmem_limit - (2 << 20), 24 << 20)
    best = 128
    tw = 128
    while tw <= l:
        if l % tw == 0 and step_bytes(tw) <= budget and n * tw * itemsize <= (4 << 20):
            best = tw
        tw += 128
    return best


# --------------------------- Whole-array fast path -----------------------------
def _fused_whole_kernel(x_ref, o_ref, *, m):
    xt = x_ref[...]                                        # (N, M)
    o_ref[:, :m] = xt                                      # passthrough copy
    xf = xt.astype(jnp.float32)
    mean = jnp.mean(xf, axis=0, keepdims=True)             # (1, M)
    var = jnp.mean((xf - mean) ** 2, axis=0, keepdims=True)  # biased, (1, M)
    s = jnp.mean(jnp.sqrt(var + jnp.float32(_EPS)))        # global scalar
    n = x_ref.shape[0]
    fill = jnp.broadcast_to(s.astype(o_ref.dtype), (n, o_ref.shape[1] - m))
    o_ref[:, m:] = fill


def _stdmap1d_whole(x_flat, n, m, w, vmem_limit):
    return pl.pallas_call(
        functools.partial(_fused_whole_kernel, m=m),
        out_shape=jax.ShapeDtypeStruct((n, w), x_flat.dtype),
        in_specs=[pl.BlockSpec(memory_space=pltpu.MemorySpace.VMEM)],
        out_specs=pl.BlockSpec(memory_space=pltpu.MemorySpace.VMEM),
        compiler_params=pltpu.CompilerParams(vmem_limit_bytes=vmem_limit),
    )(x_flat)


# ------------------------------- Tiled fused path ------------------------------
def _fused_tiled_kernel(x_ref, o_ref, acc_ref, *, num_x_blocks, inv_count):
    i = pl.program_id(0)

    @pl.when(i == 0)
    def _init():
        acc_ref[...] = jnp.zeros_like(acc_ref)

    @pl.when(i < num_x_blocks)
    def _copy_and_stats():
        xt = x_ref[...]                                    # (N, tw)
        o_ref[...] = xt                                    # passthrough, same dtype
        xf = xt.astype(jnp.float32)
        mean = jnp.mean(xf, axis=0, keepdims=True)         # (1, tw)
        var = jnp.mean((xf - mean) ** 2, axis=0, keepdims=True)
        # Elementwise accumulate; cross-lane reduce only happens in the fill.
        acc_ref[...] += jnp.sqrt(var + jnp.float32(_EPS))

    @pl.when(i >= num_x_blocks)
    def _fill_std():
        s = jnp.sum(acc_ref[...]) * jnp.float32(inv_count)
        o_ref[...] = jnp.broadcast_to(s.astype(o_ref.dtype), o_ref.shape)


def _stdmap1d_tiled(x_flat, n, c, l, itemsize, vmem_limit):
    m = c * l
    tw = _pick_col_tile(n, l, itemsize, vmem_limit)
    num_x_blocks = m // tw
    grid = ((c + 1) * l) // tw                             # covers out exactly

    kernel = functools.partial(
        _fused_tiled_kernel, num_x_blocks=num_x_blocks, inv_count=1.0 / m)

    return pl.pallas_call(
        kernel,
        out_shape=jax.ShapeDtypeStruct((n, m + l), x_flat.dtype),
        grid=(grid,),
        in_specs=[
            # Clamp so the trailing (std-fill) steps never request an
            # out-of-range x block; the block is fetched but not read there.
            pl.BlockSpec((n, tw),
                         lambda i: (0, jnp.minimum(i, num_x_blocks - 1))),
        ],
        out_specs=pl.BlockSpec((n, tw), lambda i: (0, i)),
        scratch_shapes=[pltpu.VMEM((1, tw), jnp.float32)],
        compiler_params=pltpu.CompilerParams(
            dimension_semantics=("arbitrary",),   # sequential: acc then fill
            vmem_limit_bytes=vmem_limit,
        ),
    )(x_flat)


# ----------------------------------- Wrapper -----------------------------------
@functools.partial(jax.jit, static_argnames=("force_tiled",))
def stdmap1d(x, force_tiled=False):
    """x: (N, C, L) -> (N, C+1, L), matching torch StdMap1d.forward."""
    n, c, l = x.shape
    m = c * l
    w = m + l
    itemsize = jnp.dtype(x.dtype).itemsize
    vmem_limit = _vmem_limit_bytes()

    x_flat = x.reshape(n, m)                               # free for NCL row-major

    tiled_ok = (l % 128 == 0)
    whole_bytes = n * (m + w) * itemsize + 3 * n * m * 4   # arrays + f32 temps
    use_tiled = tiled_ok and (force_tiled or whole_bytes > (4 << 20))

    if use_tiled:
        out_flat = _stdmap1d_tiled(x_flat, n, c, l, itemsize, vmem_limit)
    else:
        # TODO(synk): very large inputs with L % 128 != 0 should pad L in the
        #             caller (lane-dense out layout) rather than take this
        #             whole-array path.
        out_flat = _stdmap1d_whole(x_flat, n, m, w, vmem_limit)

    return out_flat.reshape(n, c + 1, l)


# ----------------------------------- Reference ---------------------------------
def _reference(x):
    std = x - jnp.mean(x, axis=0, keepdims=True)
    std = jnp.mean(jnp.sqrt(jnp.mean(std ** 2, axis=0) + _EPS))
    std_map = jnp.broadcast_to(std, (x.shape[0], 1, x.shape[2]))
    return jnp.concatenate((x, std_map), axis=1)


if __name__ == "__main__":
    key = jax.random.PRNGKey(0)

    # Small shape consistent with the module's forward: (batch=2, channels=4, L=16).
    x_small = jax.random.normal(key, (2, 4, 16), dtype=jnp.float32)
    out_small = stdmap1d(x_small)
    jax.block_until_ready(out_small)
    assert out_small.shape == (2, 5, 16), out_small.shape
    assert jnp.allclose(out_small, _reference(x_small), atol=1e-5, rtol=1e-5), \
        "mismatch vs reference (fast path)"

    # Also exercise the lane-aligned tiled path (L multiple of 128).
    x_big = jax.random.normal(jax.random.PRNGKey(0), (8, 4, 256), dtype=jnp.float32)
    out_big = stdmap1d(x_big, force_tiled=True)
    jax.block_until_ready(out_big)
    assert out_big.shape == (8, 5, 256), out_big.shape
    assert jnp.allclose(out_big, _reference(x_big), atol=1e-5, rtol=1e-5), \
        "mismatch vs reference (tiled path)"

    print("KERNEL_OK")
</pallas_src>

<mosaic_0001>
module attributes {stable_mosaic.version = 11 : i64} {
  func.func @_fused_whole_kernel(%arg0: memref<2x64xf32, #tpu.memory_space<vmem>>, %arg1: memref<2x80xf32, #tpu.memory_space<vmem>>) attributes {dimension_semantics = [], scalar_prefetch = 0 : i64, scratch_operands = 0 : i64, tpu.core_type = #tpu.core_type<tc>} {
    %c0 = arith.constant 0 : index
    %c0_0 = arith.constant 0 : index
    %0 = vector.load %arg0[%c0, %c0_0] : memref<2x64xf32, #tpu.memory_space<vmem>>, vector<2x64xf32>
    %c0_1 = arith.constant 0 : index
    %c0_2 = arith.constant 0 : index
    %1 = vector.load %arg1[%c0_1, %c0_2] : memref<2x80xf32, #tpu.memory_space<vmem>>, vector<2x64xf32>
    tpu.vector_store %arg1[%c0_1, %c0_2], %0 {strides = array<i32>} : memref<2x80xf32, #tpu.memory_space<vmem>>, vector<2x64xf32>,
    %cst = arith.constant dense<0.000000e+00> : vector<64xf32>
    %2 = vector.multi_reduction <add>, %0, %cst [0] : vector<2x64xf32> to vector<64xf32>
    %3 = vector.shape_cast %2 : vector<64xf32> to vector<1x64xf32>
    %cst_3 = arith.constant 2.000000e+00 : f32
    %4 = vector.broadcast %cst_3 : f32 to vector<1x64xf32>
    %5 = arith.divf %3, %4 : vector<1x64xf32>
    %6 = vector.broadcast %5 : vector<1x64xf32> to vector<2x64xf32>
    %7 = arith.subf %0, %6 : vector<2x64xf32>
    %8 = arith.mulf %7, %7 : vector<2x64xf32>
    %cst_4 = arith.constant dense<0.000000e+00> : vector<64xf32>
    %9 = vector.multi_reduction <add>, %8, %cst_4 [0] : vector<2x64xf32> to vector<64xf32>
    %10 = vector.shape_cast %9 : vector<64xf32> to vector<1x64xf32>
    %cst_5 = arith.constant 2.000000e+00 : f32
    %11 = vector.broadcast %cst_5 : f32 to vector<1x64xf32>
    %12 = arith.divf %10, %11 : vector<1x64xf32>
    %cst_6 = arith.constant 9.99999997E-7 : f32
    %13 = vector.broadcast %cst_6 : f32 to vector<1x64xf32>
    %14 = arith.addf %12, %13 : vector<1x64xf32>
    %15 = math.sqrt %14 : vector<1x64xf32>
    %16 = vector.shape_cast %15 : vector<1x64xf32> to vector<1x1x64xf32>
    %cst_7 = arith.constant dense<0.000000e+00> : vector<1xf32>
    %17 = vector.multi_reduction <add>, %16, %cst_7 [1, 2] : vector<1x1x64xf32> to vector<1xf32>
    %18 = vector.shape_cast %17 : vector<1xf32> to vector<1x1x1xf32>
    %19 = vector.extract %18[0, 0, 0] : f32 from vector<1x1x1xf32>
    %cst_8 = arith.constant 6.400000e+01 : f32
    %20 = arith.divf %19, %cst_8 : f32
    %21 = vector.broadcast %20 : f32 to vector<2x16xf32>
    %c0_9 = arith.constant 0 : index
    %c64 = arith.constant 64 : index
    %22 = vector.load %arg1[%c0_9, %c64] : memref<2x80xf32, #tpu.memory_space<vmem>>, vector<2x16xf32>
    tpu.vector_store %arg1[%c0_9, %c64], %21 {strides = array<i32>} : memref<2x80xf32, #tpu.memory_space<vmem>>, vector<2x16xf32>,
    return
  }
}

</mosaic_0001>

<llo_original>
// kernel: stdmap1d.1
$region0: #{stdmap1d.1}
  #allocation0 [shape = 'u32[]', space=smem, size = 0x4, offset = 0x4, fixed_abs, tag = 'smem constant byte address 0x4 - core index']
  #allocation1 [shape = 'u32[72,128]{1,0:T(1,128)}', space=vmem, size = 0x9000, scoped, tag = 'internal scratch']
  %s0 = inlined_call_operand.vmem [shape: f32[2,64], index: 0, kind: input, shape index: {}]
  %s1 = inlined_call_operand.vmem [shape: f32[2,80], index: 1, kind: output, shape index: {}]
  %s2 = sld [smem:[#allocation0]]
  $region14: #{stdmap1d.1} parent=0
    _
  %s4 = ssub.s32 1, %s2
  %s5 = scalar_select 0, %s4, %s2
  // Predicated region
  $region2: #{stdmap1d.1} parent=0 // pred_check
    _
  $region3: #{stdmap1d.1} parent=0 // pred_check_branch
    %7 = sbr.rel (0) target = $region5
  $region4: #{stdmap1d.1} parent=0 // pred_region
    _
  $region5: #{stdmap1d.1} parent=0 // pred_fallthru
    _
  %v8 = vld [vmem:[%s0] sm:$0x3]
  %vm9 = vcmask 517120
  %10 = vst.msk [vmem:[%s1] sm:$0x3] %vm9, %v8
  %v11 = vsel %vm9, %v8, 0.0
  %v12 = vrot.slane %v11, 4
  %v13 = vadd.f32 %v11, %v12
  %v14 = vrot.slane %v13, 2
  %v15 = vadd.f32 %v13, %v14
  %v16 = vrot.slane %v15, 1
  %v17 = vadd.f32 %v15, %v16
  %v18 = vrcp.pop 2.0
  %v19 = vmul.f32 2.0, %v18
  %v20 = vsub.f32 1.0, %v19
  %v21 = vmul.f32 %v18, %v20
  %v22 = vadd.f32 %v18, %v21
  %vm23 = vweird.f32 %v18
  %v24 = vsel %vm23, %v18, %v22
  %v25 = vmul.f32 %v17, %v24
  %v26 = vsub.f32 %v8, %v25
  %v27 = vmul.f32 %v26, %v26
  %v28 = vsel %vm9, %v27, 0.0
  %v29 = vrot.slane %v28, 4
  %v30 = vadd.f32 %v28, %v29
  %v31 = vrot.slane %v30, 2
  %v32 = vadd.f32 %v30, %v31
  %v33 = vrot.slane %v32, 1
  %v34 = vadd.f32 %v32, %v33
  %v35 = vmul.f32 %v34, %v24
  %v36 = vadd.f32 %v35, 1e-06
  %v37 = vrsqrt.pop %v36
  %v38 = vmul.f32 %v37, %v36
  %v39 = vmul.f32 %v38, %v37
  %v40 = vmul.f32 0.5, %v39
  %v41 = vsub.f32 1.5, %v40
  %v42 = vmul.f32 %v37, %v41
  %v43 = vmul.f32 %v36, %v42
  %vm44 = vcmp.eq.f32.partialorder %v36, inf
  %v45 = vsel %vm44, %v36, %v43
  %vm46 = vcmp.eq.f32.partialorder %v36, 0.0
  %v47 = vand.u32 %v36, 2147483648
  %v48 = vsel %vm46, %v47, %v45
  %vm49 = vcmask 516096
  %v50 = vsel %vm49, %v48, 0.0
  %51 = vadd.xlane.f32.xlu0 %v50
  %v52 = vpop.xlane.xlu0 %51
  %v53 = vrot.slane %v52, 4
  %v54 = vadd.f32 %v52, %v53
  %v55 = vrot.slane %v54, 2
  %v56 = vadd.f32 %v54, %v55
  %v57 = vrot.slane %v56, 1
  %v58 = vadd.f32 %v56, %v57
  %s59 = vtos %v58
  %v60 = vrcp.pop 64.0
  %v61 = vmul.f32 64.0, %v60
  %v62 = vsub.f32 1.0, %v61
  %v63 = vmul.f32 %v60, %v62
  %v64 = vadd.f32 %v60, %v63
  %vm65 = vweird.f32 %v60
  %v66 = vsel %vm65, %v60, %v64
  %s67 = vtos %v66
  %s68 = smul.f32 %s59, %s67
  %v69 = vstv %s68
  %vm70 = vcmask 648704
  %71 = vst.msk [vmem:[%s1] sm:$0x3] %vm70, %v69
  // Predicated region
  $region6: #{stdmap1d.1} parent=0 // pred_check
    _
  $region7: #{stdmap1d.1} parent=0 // pred_check_branch
    %73 = sbr.rel (0) target = $region9
  $region8: #{stdmap1d.1} parent=0 // pred_region
    _
  $region9: #{stdmap1d.1} parent=0 // pred_fallthru
    _
  // Predicated region
  $region10: #{stdmap1d.1} parent=0 // pred_check
    _
  $region11: #{stdmap1d.1} parent=0 // pred_check_branch
    %75 = sbr.rel (0) target = $region13
  $region12: #{stdmap1d.1} parent=0 // pred_region
    _
  $region13: #{stdmap1d.1} parent=0 // pred_fallthru
    _

</llo_original>
